<compile_context>
chip_gen: v6e
topology: v6e:2x2x1
jax: 0.10.0
libtpu: 0.0.40
codegen_flags: <defaults>
</compile_context>

<pallas_src>
import functools

import jax
import jax.numpy as jnp
from jax.experimental import pallas as pl
from jax.experimental.pallas import tpu as pltpu


def _round_up(x, m):
    return ((x + m - 1) // m) * m


# ----------------------------------------------------------------------------
# Chip / VMEM introspection (trace-time; conservative fallbacks).
# ----------------------------------------------------------------------------
def _chip_info():
    """Returns (vmem_capacity_bytes, num_tensorcores_per_device)."""
    vmem_cap = None
    try:
        info = pltpu.get_tpu_info()
        cap = getattr(info, "vmem_capacity_bytes", None)
        if cap:
            vmem_cap = int(cap)
    except Exception:
        vmem_cap = None

    kind = ""
    try:
        kind = jax.devices()[0].device_kind.lower()
    except Exception:
        pass

    is_v7 = "v7" in kind
    # v4/v5p/v7x expose 2 TensorCores worth of parallel grid sharding.
    num_tc = 2 if (is_v7 or "v4" in kind or "v5p" in kind) else 1
    if vmem_cap is None:
        vmem_cap = (64 << 20) if is_v7 else (128 << 20)
    return vmem_cap, num_tc


# ----------------------------------------------------------------------------
# Kernels.
# ----------------------------------------------------------------------------
def _ffn_kernel_resident(x_ref, w1_ref, b1_ref, w2_ref, b2_ref, o_ref):
    """Weights fully VMEM-resident: one (tm, E) token tile per grid step."""
    h = jnp.dot(x_ref[...], w1_ref[...], preferred_element_type=jnp.float32)
    h = jnp.maximum(h + b1_ref[...], 0.0)
    acc = jnp.dot(h.astype(w2_ref.dtype), w2_ref[...],
                  preferred_element_type=jnp.float32)
    o_ref[...] = (acc + b2_ref[...]).astype(o_ref.dtype)


def _ffn_kernel_streaming(x_ref, w1_ref, b1_ref, w2_ref, b2_ref, o_ref,
                          acc_ref):
    """One (tm, E) token tile x one th-wide hidden slice.

    The hidden grid axis is a reduction for the second matmul; partial
    products are accumulated in a f32 VMEM scratch and written out (plus
    bias2) on the last hidden step.
    """
    k = pl.program_id(1)

    @pl.when(k == 0)
    def _():
        acc_ref[...] = jnp.zeros_like(acc_ref)

    # First linear (MXU, f32 accumulation); bias + ReLU in f32 on the VPU.
    h = jnp.dot(x_ref[...], w1_ref[...], preferred_element_type=jnp.float32)
    h = jnp.maximum(h + b1_ref[...], 0.0)
    # Second linear on this hidden slice, accumulated in f32.
    acc_ref[...] += jnp.dot(h.astype(w2_ref.dtype), w2_ref[...],
                            preferred_element_type=jnp.float32)

    @pl.when(k == pl.num_programs(1) - 1)
    def _():
        o_ref[...] = (acc_ref[...] + b2_ref[...]).astype(o_ref.dtype)


# ----------------------------------------------------------------------------
# VMEM footprint estimates (double-buffered pipelined operands included).
# ----------------------------------------------------------------------------
def _vmem_resident_bytes(tm, E, H, itemsize, out_itemsize):
    x_b = 2 * tm * E * itemsize
    w1_b = 2 * E * H * itemsize          # conservative: 2 buffers even though
    w2_b = 2 * H * E * itemsize          # the constant block is fetched once
    b_b = 2 * (H + E) * 4
    out_b = 2 * tm * E * out_itemsize
    h_b = tm * H * 4 + tm * H * itemsize  # f32 intermediate + cast copy
    return x_b + w1_b + w2_b + b_b + out_b + h_b


def _vmem_streaming_bytes(tm, th, E, itemsize, out_itemsize):
    x_b = 2 * tm * E * itemsize
    w1_b = 2 * E * th * itemsize
    w2_b = 2 * th * E * itemsize
    b_b = 2 * (th + E) * 4
    out_b = 2 * tm * E * out_itemsize
    acc_b = tm * E * 4
    h_b = tm * th * 4 + tm * th * itemsize
    return x_b + w1_b + w2_b + b_b + out_b + acc_b + h_b


# ----------------------------------------------------------------------------
# Tile selection.
# ----------------------------------------------------------------------------
def _pick_tm(M, sub, num_tc, tm_cap):
    """Token row tile, multiple of the dtype sublane packing `sub`."""
    if M >= tm_cap * num_tc:
        return tm_cap
    # Only halve to create >= 2 token tiles on 2-TensorCore chips; on a
    # single-TC chip that just halves MXU occupancy for nothing.
    n_tiles = num_tc if (num_tc >= 2 and M > sub) else 1
    tm = _round_up(max(1, -(-M // n_tiles)), sub)
    return min(tm, tm_cap)


# ----------------------------------------------------------------------------
# Wrapper-side (no-copy when already aligned) pad / cast helpers.
# ----------------------------------------------------------------------------
def _pad_cast_2d(a, rows, cols, dtype):
    if a.shape == (rows, cols) and a.dtype == dtype:
        return a
    a = a.astype(dtype)
    pr, pc = rows - a.shape[0], cols - a.shape[1]
    if pr or pc:
        a = jnp.pad(a, ((0, pr), (0, pc)))
    return a


def _pad_cast_bias(b, n):
    b = b.astype(jnp.float32)
    if b.shape[0] != n:
        b = jnp.pad(b, (0, n - b.shape[0]))
    return b.reshape(1, n)


# ----------------------------------------------------------------------------
# Public entry point.
# ----------------------------------------------------------------------------
@functools.partial(jax.jit, static_argnames=("compute_dtype", "force_streaming"))
def feed_forward(x, w1, b1, w2, b2, *, compute_dtype=None,
                 force_streaming=False):
    """Fused Linear -> ReLU -> Linear.

    x: (..., embed_dim).  Weights are (in, out), i.e. y = relu(x@W1+b1)@W2+b2.
    compute_dtype: dtype of the matmul operands (e.g. jnp.bfloat16);
    accumulation and bias adds are always f32.  Output dtype matches x.
    """
    orig_shape = x.shape
    orig_dtype = x.dtype
    E = orig_shape[-1]
    H = w1.shape[1]
    if compute_dtype is None:
        compute_dtype = orig_dtype
    compute_dtype = jnp.dtype(compute_dtype)

    x2d = x.reshape(-1, E)
    M = x2d.shape[0]

    itemsize = compute_dtype.itemsize
    out_itemsize = jnp.dtype(orig_dtype).itemsize
    sub = max(8, 32 // itemsize)              # 8 f32 / 16 bf16 / 32 int8-fp8

    # Per-generation budgets.
    vmem_cap, num_tc = _chip_info()
    small_vmem = vmem_cap <= (64 << 20)       # v7x-class (64 MiB VMEM)
    vmem_limit_cap = int(vmem_cap * 0.80)     # ~100 MiB v5e/v6e, ~51 MiB v7x
    budget = vmem_limit_cap - (4 << 20)       # headroom for compiler scratch
    tm_cap = 512 if small_vmem else 1024
    th_cap = 512 if small_vmem else 2048

    E_pad = _round_up(E, 128)                 # lane-dense output stores
    H_pad = _round_up(H, 128)                 # never fall back to th = H

    tm = _pick_tm(M, sub, num_tc, tm_cap)
    M_pad = _round_up(M, tm)

    # ---- path selection ----------------------------------------------------
    resident_est = _vmem_resident_bytes(tm, E_pad, H_pad, itemsize,
                                        out_itemsize)
    use_resident = (not force_streaming) and (resident_est <= budget)

    if use_resident:
        th = H_pad
        est = resident_est
    else:
        # Hidden tile: largest 128-multiple divisor of H_pad within the cap.
        th = min(H_pad, th_cap)
        while H_pad % th != 0:
            th -= 128
        # Shrink th, then tm, until the footprint fits the budget.
        while (_vmem_streaming_bytes(tm, th, E_pad, itemsize, out_itemsize)
               > budget and th > 128):
            th -= 128
            while H_pad % th != 0:
                th -= 128
        while (_vmem_streaming_bytes(tm, th, E_pad, itemsize, out_itemsize)
               > budget and tm > sub):
            tm = max(sub, (tm // 2 // sub) * sub)
            M_pad = _round_up(M, tm)
        est = _vmem_streaming_bytes(tm, th, E_pad, itemsize, out_itemsize)

    vmem_request = max(32 << 20, int(est * 1.25) + (2 << 20))
    vmem_request = min(vmem_request, int(vmem_cap * 0.85))

    # ---- operand padding (skipped when already aligned / right dtype) -------
    # TODO(synk): for inference, cache the padded/cast weights across calls
    # instead of re-deriving them inside the jitted function.
    xp = _pad_cast_2d(x2d, M_pad, E_pad, compute_dtype)
    w1p = _pad_cast_2d(w1, E_pad, H_pad, compute_dtype)
    w2p = _pad_cast_2d(w2, H_pad, E_pad, compute_dtype)
    b1p = _pad_cast_bias(b1, H_pad)
    b2p = _pad_cast_bias(b2, E_pad)

    if use_resident:
        grid = (M_pad // tm,)
        in_specs = [
            pl.BlockSpec((tm, E_pad), lambda i: (i, 0)),        # x row tile
            pl.BlockSpec((E_pad, H_pad), lambda i: (0, 0)),     # W1 (resident)
            pl.BlockSpec((1, H_pad), lambda i: (0, 0)),         # b1
            pl.BlockSpec((H_pad, E_pad), lambda i: (0, 0)),     # W2 (resident)
            pl.BlockSpec((1, E_pad), lambda i: (0, 0)),         # b2
        ]
        out_specs = pl.BlockSpec((tm, E_pad), lambda i: (i, 0))
        scratch_shapes = []
        kernel = _ffn_kernel_resident
        dims = ("parallel",)
    else:
        # TODO(synk): optionally pipeline_mode=pl.Buffered(3) on W1/W2 specs
        # on v5e/v6e when VMEM headroom remains and DMA latency is exposed.
        grid = (M_pad // tm, H_pad // th)
        in_specs = [
            pl.BlockSpec((tm, E_pad), lambda i, k: (i, 0)),     # x row tile
            pl.BlockSpec((E_pad, th), lambda i, k: (0, k)),     # W1 slice
            pl.BlockSpec((1, th), lambda i, k: (0, k)),         # b1 slice
            pl.BlockSpec((th, E_pad), lambda i, k: (k, 0)),     # W2 slice
            pl.BlockSpec((1, E_pad), lambda i, k: (0, 0)),      # b2
        ]
        out_specs = pl.BlockSpec((tm, E_pad), lambda i, k: (i, 0))
        scratch_shapes = [pltpu.VMEM((tm, E_pad), jnp.float32)]
        kernel = _ffn_kernel_streaming
        dims = ("parallel", "arbitrary")

    out = pl.pallas_call(
        kernel,
        out_shape=jax.ShapeDtypeStruct((M_pad, E_pad), orig_dtype),
        grid_spec=pltpu.PrefetchScalarGridSpec(
            num_scalar_prefetch=0,
            grid=grid,
            in_specs=in_specs,
            out_specs=out_specs,
            scratch_shapes=scratch_shapes,
        ),
        compiler_params=pltpu.CompilerParams(
            dimension_semantics=dims,
            vmem_limit_bytes=vmem_request,
        ),
    )(xp, w1p, b1p, w2p, b2p)

    if M_pad == M and E_pad == E:
        return out.reshape(orig_shape)
    return out[:M, :E].reshape(orig_shape)


def init_feed_forward_params(key, embed_dim, hidden_dim, dtype=jnp.float32):
    """Deterministic init mimicking nn.Linear (uniform +-1/sqrt(fan_in)).

    Weights stored transposed relative to PyTorch: (in, out)."""
    k1, k2, k3, k4 = jax.random.split(key, 4)
    lim1 = 1.0 / (embed_dim ** 0.5)
    lim2 = 1.0 / (hidden_dim ** 0.5)
    w1 = jax.random.uniform(k1, (embed_dim, hidden_dim), dtype, -lim1, lim1)
    b1 = jax.random.uniform(k2, (hidden_dim,), dtype, -lim1, lim1)
    w2 = jax.random.uniform(k3, (hidden_dim, embed_dim), dtype, -lim2, lim2)
    b2 = jax.random.uniform(k4, (embed_dim,), dtype, -lim2, lim2)
    return w1, b1, w2, b2


if __name__ == "__main__":
    key = jax.random.PRNGKey(0)
    batch, seq, embed_dim, hidden_dim = 2, 8, 32, 64

    kx, kp = jax.random.split(key)
    x = jax.random.normal(kx, (batch, seq, embed_dim), jnp.float32)
    w1, b1, w2, b2 = init_feed_forward_params(kp, embed_dim, hidden_dim)

    # Plain-JAX reference.
    ref = jnp.maximum(x @ w1 + b1, 0.0) @ w2 + b2

    # f32, weight-resident fast path (strict check).
    out = jax.block_until_ready(feed_forward(x, w1, b1, w2, b2))
    assert out.shape == x.shape and out.dtype == x.dtype
    assert jnp.allclose(out, ref, atol=1e-5, rtol=1e-5)

    # f32, streaming (hidden-reduction) path forced for coverage.
    out_s = jax.block_until_ready(
        feed_forward(x, w1, b1, w2, b2, force_streaming=True))
    assert out_s.shape == x.shape and out_s.dtype == x.dtype
    assert jnp.allclose(out_s, ref, atol=1e-5, rtol=1e-5)

    # bf16 matmul operands (f32 accumulation) — looser tolerance.
    out_bf16 = jax.block_until_ready(
        feed_forward(x, w1, b1, w2, b2, compute_dtype=jnp.bfloat16))
    assert out_bf16.shape == x.shape and out_bf16.dtype == x.dtype
    assert jnp.allclose(out_bf16, ref, atol=5e-2, rtol=5e-2)

    print("KERNEL_OK")
</pallas_src>

<mosaic_0001>
module attributes {stable_mosaic.version = 11 : i64} {
  func.func @_ffn_kernel_resident(%arg0: i32, %arg1: memref<16x128xf32, #tpu.memory_space<vmem>>, %arg2: memref<128x128xf32, #tpu.memory_space<vmem>>, %arg3: memref<1x128xf32, #tpu.memory_space<vmem>>, %arg4: memref<128x128xf32, #tpu.memory_space<vmem>>, %arg5: memref<1x128xf32, #tpu.memory_space<vmem>>, %arg6: memref<16x128xf32, #tpu.memory_space<vmem>>) attributes {dimension_semantics = [#tpu.dimension_semantics<parallel>], iteration_bounds = array<i64: 1>, scalar_prefetch = 0 : i64, scratch_operands = 0 : i64, tpu.core_type = #tpu.core_type<tc>, window_params = [{transform_indices = @transform_0, window_bounds = array<i64: 16, 128>}, {pipeline_mode = #tpu.pipeline_mode<synchronous>, transform_indices = @transform_1, window_bounds = array<i64: 128, 128>}, {pipeline_mode = #tpu.pipeline_mode<synchronous>, transform_indices = @transform_2, window_bounds = array<i64: 1, 128>}, {pipeline_mode = #tpu.pipeline_mode<synchronous>, transform_indices = @transform_3, window_bounds = array<i64: 128, 128>}, {pipeline_mode = #tpu.pipeline_mode<synchronous>, transform_indices = @transform_4, window_bounds = array<i64: 1, 128>}, {transform_indices = @transform_5, window_bounds = array<i64: 16, 128>}]} {
    %c0 = arith.constant 0 : index
    %c0_0 = arith.constant 0 : index
    %0 = vector.load %arg1[%c0, %c0_0] : memref<16x128xf32, #tpu.memory_space<vmem>>, vector<16x128xf32>
    %c0_1 = arith.constant 0 : index
    %c0_2 = arith.constant 0 : index
    %1 = vector.load %arg2[%c0_1, %c0_2] : memref<128x128xf32, #tpu.memory_space<vmem>>, vector<128x128xf32>
    %cst = arith.constant dense<0.000000e+00> : vector<16x128xf32>
    %2 = tpu.matmul %0, %1, %cst {dimension_numbers = #tpu.dot_dimension_numbers<[1], [0], [0], [1], [0, 0, 1, 1], [], []>} : vector<16x128xf32>, vector<128x128xf32>, vector<16x128xf32> -> vector<16x128xf32>
    %c0_3 = arith.constant 0 : index
    %c0_4 = arith.constant 0 : index
    %3 = vector.load %arg3[%c0_3, %c0_4] : memref<1x128xf32, #tpu.memory_space<vmem>>, vector<1x128xf32>
    %4 = vector.broadcast %3 : vector<1x128xf32> to vector<16x128xf32>
    %5 = arith.addf %2, %4 : vector<16x128xf32>
    %cst_5 = arith.constant 0.000000e+00 : f32
    %6 = vector.broadcast %cst_5 : f32 to vector<16x128xf32>
    %7 = arith.maximumf %5, %6 : vector<16x128xf32>
    %c0_6 = arith.constant 0 : index
    %c0_7 = arith.constant 0 : index
    %8 = vector.load %arg4[%c0_6, %c0_7] : memref<128x128xf32, #tpu.memory_space<vmem>>, vector<128x128xf32>
    %cst_8 = arith.constant dense<0.000000e+00> : vector<16x128xf32>
    %9 = tpu.matmul %7, %8, %cst_8 {dimension_numbers = #tpu.dot_dimension_numbers<[1], [0], [0], [1], [0, 0, 1, 1], [], []>} : vector<16x128xf32>, vector<128x128xf32>, vector<16x128xf32> -> vector<16x128xf32>
    %c0_9 = arith.constant 0 : index
    %c0_10 = arith.constant 0 : index
    %10 = vector.load %arg5[%c0_9, %c0_10] : memref<1x128xf32, #tpu.memory_space<vmem>>, vector<1x128xf32>
    %11 = vector.broadcast %10 : vector<1x128xf32> to vector<16x128xf32>
    %12 = arith.addf %9, %11 : vector<16x128xf32>
    %c0_11 = arith.constant 0 : index
    %c0_12 = arith.constant 0 : index
    %13 = vector.load %arg6[%c0_11, %c0_12] : memref<16x128xf32, #tpu.memory_space<vmem>>, vector<16x128xf32>
    tpu.vector_store %arg6[%c0_11, %c0_12], %12 {strides = array<i32>} : memref<16x128xf32, #tpu.memory_space<vmem>>, vector<16x128xf32>,
    return
  }
  func.func @transform_0(%arg0: i32) -> (i32, i32) {
    %c0_i32 = arith.constant 0 : i32
    %c0_i32_0 = arith.constant 0 : i32
    return %arg0, %c0_i32 : i32, i32
  }
  func.func @transform_1(%arg0: i32) -> (i32, i32) {
    %c0_i32 = arith.constant 0 : i32
    %c0_i32_0 = arith.constant 0 : i32
    %c0_i32_1 = arith.constant 0 : i32
    return %c0_i32, %c0_i32_0 : i32, i32
  }
  func.func @transform_2(%arg0: i32) -> (i32, i32) {
    %c0_i32 = arith.constant 0 : i32
    %c0_i32_0 = arith.constant 0 : i32
    %c0_i32_1 = arith.constant 0 : i32
    return %c0_i32, %c0_i32_0 : i32, i32
  }
  func.func @transform_3(%arg0: i32) -> (i32, i32) {
    %c0_i32 = arith.constant 0 : i32
    %c0_i32_0 = arith.constant 0 : i32
    %c0_i32_1 = arith.constant 0 : i32
    return %c0_i32, %c0_i32_0 : i32, i32
  }
  func.func @transform_4(%arg0: i32) -> (i32, i32) {
    %c0_i32 = arith.constant 0 : i32
    %c0_i32_0 = arith.constant 0 : i32
    %c0_i32_1 = arith.constant 0 : i32
    return %c0_i32, %c0_i32_0 : i32, i32
  }
  func.func @transform_5(%arg0: i32) -> (i32, i32) {
    %c0_i32 = arith.constant 0 : i32
    %c0_i32_0 = arith.constant 0 : i32
    return %arg0, %c0_i32 : i32, i32
  }
}

</mosaic_0001>

<llo_original>
// kernel: feed_forward.1
$region0: #{feed_forward.1}
  #allocation0 [shape = 'u32[]', space=smem, size = 0x4, offset = 0x4, fixed_abs, tag = 'smem constant byte address 0x4 - core index']
  #allocation1 [shape = 'u32[144,128]{1,0:T(1,128)}', space=vmem, size = 0x12000, scoped, tag = 'internal scratch']
  %s0 = inlined_call_operand.vmem [shape: f32[16,128], index: 0, kind: input, shape index: {}]
  %s1 = inlined_call_operand.vmem [shape: f32[128,128], index: 1, kind: input, shape index: {}]
  %s2 = inlined_call_operand.vmem [shape: f32[1,128], index: 2, kind: input, shape index: {}]
  %s3 = inlined_call_operand.vmem [shape: f32[128,128], index: 3, kind: input, shape index: {}]
  %s4 = inlined_call_operand.vmem [shape: f32[1,128], index: 4, kind: input, shape index: {}]
  %s5 = inlined_call_operand.vmem [shape: f32[16,128], index: 5, kind: output, shape index: {}]
  %s6 = sld [smem:[#allocation0]]
  $region30: #{feed_forward.1} parent=0
    _
  %s8 = ssub.s32 1, %s6
  %s9 = scalar_select 0, %s8, %s6
  // Predicated region
  $region2: #{feed_forward.1} parent=0 // pred_check
    _
  $region3: #{feed_forward.1} parent=0 // pred_check_branch
    %11 = sbr.rel (0) target = $region5
  $region4: #{feed_forward.1} parent=0 // pred_region
    _
  $region5: #{feed_forward.1} parent=0 // pred_fallthru
    _
  // Predicated region
  $region6: #{feed_forward.1} parent=0 // pred_check
    _
  $region7: #{feed_forward.1} parent=0 // pred_check_branch
    %13 = sbr.rel (0) target = $region9
  $region8: #{feed_forward.1} parent=0 // pred_region
    _
  $region9: #{feed_forward.1} parent=0 // pred_fallthru
    _
  // Predicated region
  $region10: #{feed_forward.1} parent=0 // pred_check
    _
  $region11: #{feed_forward.1} parent=0 // pred_check_branch
    %15 = sbr.rel (0) target = $region13
  $region12: #{feed_forward.1} parent=0 // pred_region
    _
  $region13: #{feed_forward.1} parent=0 // pred_fallthru
    _
  // Predicated region
  $region14: #{feed_forward.1} parent=0 // pred_check
    _
  $region15: #{feed_forward.1} parent=0 // pred_check_branch
    %17 = sbr.rel (0) target = $region17
  $region16: #{feed_forward.1} parent=0 // pred_region
    _
  $region17: #{feed_forward.1} parent=0 // pred_fallthru
    _
  // Predicated region
  $region18: #{feed_forward.1} parent=0 // pred_check
    _
  $region19: #{feed_forward.1} parent=0 // pred_check_branch
    %19 = sbr.rel (0) target = $region21
  $region20: #{feed_forward.1} parent=0 // pred_region
    _
  $region21: #{feed_forward.1} parent=0 // pred_fallthru
    _
  %v20 = vld [vmem:[%s0] sm:$0xff]
  %v21 = vld [vmem:[%s0 + $0x8] sm:$0xff]
  %v22 = vld [vmem:[%s1] sm:$0xff]
  %v23 = vld [vmem:[%s1 + $0x8] sm:$0xff]
  %v24 = vld [vmem:[%s1 + $0x10] sm:$0xff]
  %v25 = vld [vmem:[%s1 + $0x18] sm:$0xff]
  %v26 = vld [vmem:[%s1 + $0x20] sm:$0xff]
  %v27 = vld [vmem:[%s1 + $0x28] sm:$0xff]
  %v28 = vld [vmem:[%s1 + $0x30] sm:$0xff]
  %v29 = vld [vmem:[%s1 + $0x38] sm:$0xff]
  %v30 = vld [vmem:[%s1 + $0x40] sm:$0xff]
  %v31 = vld [vmem:[%s1 + $0x48] sm:$0xff]
  %v32 = vld [vmem:[%s1 + $0x50] sm:$0xff]
  %v33 = vld [vmem:[%s1 + $0x58] sm:$0xff]
  %v34 = vld [vmem:[%s1 + $0x60] sm:$0xff]
  %v35 = vld [vmem:[%s1 + $0x68] sm:$0xff]
  %v36 = vld [vmem:[%s1 + $0x70] sm:$0xff]
  %v37 = vld [vmem:[%s1 + $0x78] sm:$0xff]
  %v38 = vld [vmem:[%s2] sm:$0x1]
  %v40 = vlaneseq
  %v41 = vshrl.u32 %v40, 7
  %v42 = vsub.s32 0, %v41
  %v43 = vrot.slane %v38, %v42
  %45 = vmatprep.subr.mxu0 0.0
  %46 = vmatpush1.msra.mxu0 %v37
  %47 = vmatprep.subr.mxu0 0.0
  %48 = vmatpush1.msra.mxu0 %v36
  %49 = vmatprep.subr.mxu0 0.0
  %50 = vmatpush1.msra.mxu0 %v35
  %51 = vmatprep.subr.mxu0 0.0
  %52 = vmatpush1.msra.mxu0 %v34
  %53 = vmatprep.subr.mxu0 0.0
  %54 = vmatpush1.msra.mxu0 %v33
  %55 = vmatprep.subr.mxu0 0.0
  %56 = vmatpush1.msra.mxu0 %v32
  %57 = vmatprep.subr.mxu0 0.0
  %58 = vmatpush1.msra.mxu0 %v31
  %59 = vmatprep.subr.mxu0 0.0
  %60 = vmatpush1.msra.mxu0 %v30
  %61 = vmatprep.subr.mxu0 0.0
  %62 = vmatpush1.msra.mxu0 %v29
  %63 = vmatprep.subr.mxu0 0.0
  %64 = vmatpush1.msra.mxu0 %v28
  %65 = vmatprep.subr.mxu0 0.0
  %66 = vmatpush1.msra.mxu0 %v27
  %67 = vmatprep.subr.mxu0 0.0
  %68 = vmatpush1.msra.mxu0 %v26
  %69 = vmatprep.subr.mxu0 0.0
  %70 = vmatpush1.msra.mxu0 %v25
  %71 = vmatprep.subr.mxu0 0.0
  %72 = vmatpush1.msra.mxu0 %v24
  %73 = vmatprep.subr.mxu0 0.0
  %74 = vmatpush1.msra.mxu0 %v23
  %75 = vmatprep.subr.mxu0 0.0
  %76 = vmatpush1.msra.mxu0 %v22
  %77 = vmatprep.subr.mxu0 0.0
  %78 = vmatpush2.msra.mxu0 0.0
  %79 = vmatprep.subr.mxu0 0.0
  %80 = vmatpush2.msra.mxu0 0.0
  %81 = vmatprep.subr.mxu0 0.0
  %82 = vmatpush2.msra.mxu0 0.0
  %83 = vmatprep.subr.mxu0 0.0
  %84 = vmatpush2.msra.mxu0 0.0
  %85 = vmatprep.subr.mxu0 0.0
  %86 = vmatpush2.msra.mxu0 0.0
  %87 = vmatprep.subr.mxu0 0.0
  %88 = vmatpush2.msra.mxu0 0.0
  %89 = vmatprep.subr.mxu0 0.0
  %90 = vmatpush2.msra.mxu0 0.0
  %91 = vmatprep.subr.mxu0 0.0
  %92 = vmatpush2.msra.mxu0 0.0
  %93 = vmatprep.subr.mxu0 0.0
  %94 = vmatpush2.msra.mxu0 0.0
  %95 = vmatprep.subr.mxu0 0.0
  %96 = vmatpush2.msra.mxu0 0.0
  %97 = vmatprep.subr.mxu0 0.0
  %98 = vmatpush2.msra.mxu0 0.0
  %99 = vmatprep.subr.mxu0 0.0
  %100 = vmatpush2.msra.mxu0 0.0
  %101 = vmatprep.subr.mxu0 0.0
  %102 = vmatpush2.msra.mxu0 0.0
  %103 = vmatprep.subr.mxu0 0.0
  %104 = vmatpush2.msra.mxu0 0.0
  %105 = vmatprep.subr.mxu0 0.0
  %106 = vmatpush2.msra.mxu0 0.0
  %107 = vmatprep.subr.mxu0 0.0
  %108 = vmatpush2.msra.mxu0 0.0
  %109 = vmatprep.mubr.f32.mxu0 0.0
  %110 = vmatmul.mubr.f32.gmra.mxu0 %v20
  %v111 = vpop.f32.mrf.mxu0
  %v112 = vadd.f32 %v43, %v111
  %v113 = vpop.f32.mrf.mxu0
  %114 = vmatprep.mubr.f32.mxu0 0.0
  %115 = vmatmul.mubr.f32.gmra.mxu0 %v21
  %v116 = vpop.f32.mrf.mxu0
  %v117 = vadd.f32 %v43, %v116
  %v118 = vpop.f32.mrf.mxu0
  %119 = vdwg.mxu0
  %v120 = vmax.f32 %v112, 0.0
  %v121 = vmax.f32 %v117, 0.0
  %v122 = vld [vmem:[%s3] sm:$0xff]
  %v123 = vld [vmem:[%s3 + $0x8] sm:$0xff]
  %v124 = vld [vmem:[%s3 + $0x10] sm:$0xff]
  %v125 = vld [vmem:[%s3 + $0x18] sm:$0xff]
  %v126 = vld [vmem:[%s3 + $0x20] sm:$0xff]
  %v127 = vld [vmem:[%s3 + $0x28] sm:$0xff]
  %v128 = vld [vmem:[%s3 + $0x30] sm:$0xff]
  %v129 = vld [vmem:[%s3 + $0x38] sm:$0xff]
  %v130 = vld [vmem:[%s3 + $0x40] sm:$0xff]
  %v131 = vld [vmem:[%s3 + $0x48] sm:$0xff]
  %v132 = vld [vmem:[%s3 + $0x50] sm:$0xff]
  %v133 = vld [vmem:[%s3 + $0x58] sm:$0xff]
  %v134 = vld [vmem:[%s3 + $0x60] sm:$0xff]
  %v135 = vld [vmem:[%s3 + $0x68] sm:$0xff]
  %v136 = vld [vmem:[%s3 + $0x70] sm:$0xff]
  %v137 = vld [vmem:[%s3 + $0x78] sm:$0xff]
  %v138 = vld [vmem:[%s4] sm:$0x1]
  %v140 = vlaneseq
  %v141 = vshrl.u32 %v140, 7
  %v142 = vsub.s32 0, %v141
  %v143 = vrot.slane %v138, %v142
  %145 = vmatprep.subr.mxu0 0.0
  %146 = vmatpush1.msra.mxu0 %v137
  %147 = vmatprep.subr.mxu0 0.0
  %148 = vmatpush1.msra.mxu0 %v136
  %149 = vmatprep.subr.mxu0 0.0
  %150 = vmatpush1.msra.mxu0 %v135
  %151 = vmatprep.subr.mxu0 0.0
  %152 = vmatpush1.msra.mxu0 %v134
  %153 = vmatprep.subr.mxu0 0.0
  %154 = vmatpush1.msra.mxu0 %v133
  %155 = vmatprep.subr.mxu0 0.0
  %156 = vmatpush1.msra.mxu0 %v132
  %157 = vmatprep.subr.mxu0 0.0
  %158 = vmatpush1.msra.mxu0 %v131
  %159 = vmatprep.subr.mxu0 0.0
  %160 = vmatpush1.msra.mxu0 %v130
  %161 = vmatprep.subr.mxu0 0.0
  %162 = vmatpush1.msra.mxu0 %v129
  %163 = vmatprep.subr.mxu0 0.0
  %164 = vmatpush1.msra.mxu0 %v128
  %165 = vmatprep.subr.mxu0 0.0
  %166 = vmatpush1.msra.mxu0 %v127
  %167 = vmatprep.subr.mxu0 0.0
  %168 = vmatpush1.msra.mxu0 %v126
  %169 = vmatprep.subr.mxu0 0.0
  %170 = vmatpush1.msra.mxu0 %v125
  %171 = vmatprep.subr.mxu0 0.0
  %172 = vmatpush1.msra.mxu0 %v124
  %173 = vmatprep.subr.mxu0 0.0
  %174 = vmatpush1.msra.mxu0 %v123
  %175 = vmatprep.subr.mxu0 0.0
  %176 = vmatpush1.msra.mxu0 %v122
  %177 = vmatprep.subr.mxu0 0.0
  %178 = vmatpush2.msra.mxu0 0.0
  %179 = vmatprep.subr.mxu0 0.0
  %180 = vmatpush2.msra.mxu0 0.0
  %181 = vmatprep.subr.mxu0 0.0
  %182 = vmatpush2.msra.mxu0 0.0
  %183 = vmatprep.subr.mxu0 0.0
  %184 = vmatpush2.msra.mxu0 0.0
  %185 = vmatprep.subr.mxu0 0.0
  %186 = vmatpush2.msra.mxu0 0.0
  %187 = vmatprep.subr.mxu0 0.0
  %188 = vmatpush2.msra.mxu0 0.0
  %189 = vmatprep.subr.mxu0 0.0
  %190 = vmatpush2.msra.mxu0 0.0
  %191 = vmatprep.subr.mxu0 0.0
  %192 = vmatpush2.msra.mxu0 0.0
  %193 = vmatprep.subr.mxu0 0.0
  %194 = vmatpush2.msra.mxu0 0.0
  %195 = vmatprep.subr.mxu0 0.0
  %196 = vmatpush2.msra.mxu0 0.0
  %197 = vmatprep.subr.mxu0 0.0
  %198 = vmatpush2.msra.mxu0 0.0
  %199 = vmatprep.subr.mxu0 0.0
  %200 = vmatpush2.msra.mxu0 0.0
  %201 = vmatprep.subr.mxu0 0.0
  %202 = vmatpush2.msra.mxu0 0.0
  %203 = vmatprep.subr.mxu0 0.0
  %204 = vmatpush2.msra.mxu0 0.0
  %205 = vmatprep.subr.mxu0 0.0
  %206 = vmatpush2.msra.mxu0 0.0
  %207 = vmatprep.subr.mxu0 0.0
  %208 = vmatpush2.msra.mxu0 0.0
  %209 = vmatprep.mubr.f32.mxu0 0.0
  %210 = vmatmul.mubr.f32.gmra.mxu0 %v120
  %v211 = vpop.f32.mrf.mxu0
  %v212 = vadd.f32 %v143, %v211
  %v213 = vpop.f32.mrf.mxu0
  %214 = vmatprep.mubr.f32.mxu0 0.0
  %215 = vmatmul.mubr.f32.gmra.mxu0 %v121
  %v216 = vpop.f32.mrf.mxu0
  %v217 = vadd.f32 %v143, %v216
  %v218 = vpop.f32.mrf.mxu0
  %219 = vdwg.mxu0
  %220 = vst [vmem:[%s5] sm:$0xff] %v212
  %221 = vst [vmem:[%s5 + $0x8] sm:$0xff] %v217
  // Predicated region
  $region22: #{feed_forward.1} parent=0 // pred_check
    _
  $region23: #{feed_forward.1} parent=0 // pred_check_branch
    %223 = sbr.rel (0) target = $region25
  $region24: #{feed_forward.1} parent=0 // pred_region
    _
  $region25: #{feed_forward.1} parent=0 // pred_fallthru
    _
  // Predicated region
  $region26: #{feed_forward.1} parent=0 // pred_check
    _
  $region27: #{feed_forward.1} parent=0 // pred_check_branch
    %225 = sbr.rel (0) target = $region29
  $region28: #{feed_forward.1} parent=0 // pred_region
    _
  $region29: #{feed_forward.1} parent=0 // pred_fallthru
    _

</llo_original>
